<compile_context>
chip_gen: v5e
topology: v5e:2x2
jax: 0.10.0
libtpu: 0.0.40
codegen_flags: <defaults>
</compile_context>

<pallas_src>
import functools

import jax
import jax.numpy as jnp
from jax.experimental import pallas as pl
from jax.experimental.pallas import tpu as pltpu


def _round_up(x, m):
    return ((x + m - 1) // m) * m


def _embed_dropout_kernel(seed_ref, ids_ref, table_ref, out_ref, *,
                          dropout_p, tile_m):
    # seed_ref:  (1,)          int32   SMEM (scalar prefetch)
    # ids_ref:   (tile_m, 1)   int32   VMEM per-tile token ids
    # table_ref: (v_pad, E)    float32 VMEM, full (padded) table resident
    # out_ref:   (tile_m, E)   output tile
    v_pad = table_ref.shape[0]
    e = out_ref.shape[1]

    # ---- Embedding lookup as one-hot @ table on the MXU (small-vocab path).
    # An id outside [0, v) yields an all-zero one-hot row -> zero embedding,
    # never an out-of-bounds memory access.
    ids = ids_ref[...]                                                 # (tile_m, 1)
    vocab_iota = jax.lax.broadcasted_iota(jnp.int32, (tile_m, v_pad), 1)
    one_hot = (ids == vocab_iota).astype(table_ref.dtype)              # (tile_m, v_pad)
    emb = jnp.dot(one_hot, table_ref[...],
                  preferred_element_type=jnp.float32)                  # (tile_m, E) f32

    # ---- Fused dropout: stateless hash of (global element index, seed).
    if dropout_p > 0.0:
        keep_prob = 1.0 - dropout_p
        base = pl.program_id(0) * tile_m
        row = jax.lax.broadcasted_iota(jnp.int32, (tile_m, e), 0)
        col = jax.lax.broadcasted_iota(jnp.int32, (tile_m, e), 1)
        gidx = (row + base) * e + col                                  # global element id
        h = gidx.astype(jnp.uint32)
        h = h ^ (seed_ref[0].astype(jnp.uint32) * jnp.uint32(0x9E3779B9))
        # murmur3 finalizer mixing
        h = h ^ (h >> 16)
        h = h * jnp.uint32(0x85EBCA6B)
        h = h ^ (h >> 13)
        h = h * jnp.uint32(0xC2B2AE35)
        h = h ^ (h >> 16)
        # Integer-domain keep test: top 31 bits uniform in [0, 2^31).
        thresh = jnp.int32(int(keep_prob * (1 << 31)))                 # Python-time const
        keep = (h >> 1).astype(jnp.int32) < thresh
        emb = jnp.where(keep, emb * jnp.float32(1.0 / keep_prob), jnp.float32(0.0))

    out_ref[...] = emb.astype(out_ref.dtype)            # single lane-dense store


def embedder_forward(ids, table, *, dropout_p=0.0, seed=0, tile_m=1024,
                     out_dtype=jnp.float32):
    """ids: int32 [B, S]; table: float32 [V, E]; returns [B, S, E] (out_dtype)."""
    b, s = ids.shape
    v, e = table.shape
    n = b * s

    # Tile size: multiple of 8 sublanes, capped so the grid has >= 2 steps
    # whenever possible (so "parallel" can shard across both v7x TensorCores).
    tm = max(8, min(tile_m, _round_up(max(n // 2, 1), 8)))
    n_pad = _round_up(n, tm)

    # Pad the vocab axis to a lane-aligned multiple of 128 (zero rows; never
    # selected since ids < V).  Keeps one-hot / MXU contraction dims aligned.
    v_pad = _round_up(v, 128)
    table_p = table if v_pad == v else jnp.pad(table, ((0, v_pad - v), (0, 0)))

    ids_flat = ids.reshape(n).astype(jnp.int32)
    if n_pad != n:
        ids_flat = jnp.pad(ids_flat, (0, n_pad - n))     # pad with id 0 (valid)
    ids_2d = ids_flat.reshape(n_pad, 1)
    seed_arr = jnp.array([seed], dtype=jnp.int32)

    kernel = functools.partial(_embed_dropout_kernel,
                               dropout_p=float(dropout_p), tile_m=tm)

    out_flat = pl.pallas_call(
        kernel,
        out_shape=jax.ShapeDtypeStruct((n_pad, e), out_dtype),
        grid_spec=pltpu.PrefetchScalarGridSpec(
            num_scalar_prefetch=1,                       # seed -> SMEM
            grid=(n_pad // tm,),
            in_specs=[
                # Per-tile token ids (pipelined VMEM input, no SMEM blow-up).
                pl.BlockSpec((tm, 1), lambda i, seed_ref: (i, 0)),
                # Full (padded) table resident in VMEM; constant index_map so it
                # is fetched once.  (For a real 32k vocab, single-buffer it /
                # move it to HBM + DMA gather instead.)
                pl.BlockSpec((v_pad, e), lambda i, seed_ref: (0, 0)),
            ],
            out_specs=pl.BlockSpec((tm, e), lambda i, seed_ref: (i, 0)),
        ),
        compiler_params=pltpu.CompilerParams(
            # Tiles are fully independent (stateless hash dropout) -> parallel
            # shards the grid across both TensorCores on v7x; neutral elsewhere.
            dimension_semantics=("parallel",),
        ),
    )(seed_arr, ids_2d, table_p)

    return out_flat[:n].reshape(b, s, e)


if __name__ == "__main__":
    # Small synthetic configuration consistent with the module:
    #   vocab (len(field.vocab)) = 64, embed_dim = 128, dropout_p = 0.1
    VOCAB = 64
    EMBED_DIM = 128
    DROPOUT_P = 0.1
    B, S = 2, 128        # 256 tokens -> two (128, 128) tiles (grid of 2)

    key = jax.random.PRNGKey(0)
    k_tab, k_ids = jax.random.split(key)

    # Deterministic synthetic parameters (not loaded from a checkpoint).
    table = jax.random.normal(k_tab, (VOCAB, EMBED_DIM), dtype=jnp.float32)
    ids = jax.random.randint(k_ids, (B, S), 0, VOCAB, dtype=jnp.int32)

    # 1) Pure embedding path (dropout_p = 0 -> identity dropout).
    out_no_drop = jax.block_until_ready(embedder_forward(ids, table, dropout_p=0.0))
    ref = jnp.take(table, ids, axis=0)
    assert out_no_drop.shape == (B, S, EMBED_DIM)
    assert jnp.allclose(out_no_drop, ref, atol=1e-5, rtol=1e-5)

    # 1b) Padding path: token count not a multiple of the tile.
    ids_odd = jax.random.randint(jax.random.PRNGKey(7), (3, 37), 0, VOCAB,
                                 dtype=jnp.int32)
    out_odd = jax.block_until_ready(embedder_forward(ids_odd, table, dropout_p=0.0))
    ref_odd = jnp.take(table, ids_odd, axis=0)
    assert jnp.allclose(out_odd, ref_odd, atol=1e-5, rtol=1e-5)

    # 2) Training-mode forward with dropout.
    out = jax.block_until_ready(
        embedder_forward(ids, table, dropout_p=DROPOUT_P, seed=123))
    assert out.shape == (B, S, EMBED_DIM)
    keep_prob = 1.0 - DROPOUT_P
    # Kept elements must equal ref / keep_prob; dropped elements are exactly 0.
    kept = out != 0.0
    assert jnp.allclose(jnp.where(kept, out * keep_prob, 0.0),
                        jnp.where(kept, ref, 0.0), atol=1e-4, rtol=1e-4)
    zero_frac = 1.0 - jnp.mean(kept.astype(jnp.float32))
    assert 0.02 < float(zero_frac) < 0.3, f"unexpected drop rate {zero_frac}"

    print("KERNEL_OK")
</pallas_src>

<mosaic_0001>
module attributes {stable_mosaic.version = 11 : i64} {
  func.func @_embed_dropout_kernel(%arg0: i32, %arg1: memref<1xi32, #tpu.memory_space<smem>>, %arg2: memref<128x1xi32, #tpu.memory_space<vmem>>, %arg3: memref<128x128xf32, #tpu.memory_space<vmem>>, %arg4: memref<128x128xf32, #tpu.memory_space<vmem>>) attributes {dimension_semantics = [#tpu.dimension_semantics<parallel>], iteration_bounds = array<i64: 2>, scalar_prefetch = 1 : i64, scratch_operands = 0 : i64, tpu.core_type = #tpu.core_type<tc>, window_params = [{transform_indices = @transform_0, window_bounds = array<i64: 128, 1>}, {pipeline_mode = #tpu.pipeline_mode<synchronous>, transform_indices = @transform_1, window_bounds = array<i64: 128, 128>}, {transform_indices = @transform_2, window_bounds = array<i64: 128, 128>}]} {
    %c0 = arith.constant 0 : index
    %c0_0 = arith.constant 0 : index
    %0 = vector.load %arg2[%c0, %c0_0] : memref<128x1xi32, #tpu.memory_space<vmem>>, vector<128x1xi32>
    %1 = tpu.iota {dimensions = array<i32: 1>} : vector<128x128xi32>
    %2 = vector.broadcast %0 : vector<128x1xi32> to vector<128x128xi32>
    %3 = arith.cmpi eq, %2, %1 : vector<128x128xi32>
    %4 = arith.extui %3 : vector<128x128xi1> to vector<128x128xi32>
    %5 = arith.sitofp %4 : vector<128x128xi32> to vector<128x128xf32>
    %c0_1 = arith.constant 0 : index
    %c0_2 = arith.constant 0 : index
    %6 = vector.load %arg3[%c0_1, %c0_2] : memref<128x128xf32, #tpu.memory_space<vmem>>, vector<128x128xf32>
    %cst = arith.constant dense<0.000000e+00> : vector<128x128xf32>
    %7 = tpu.matmul %5, %6, %cst {dimension_numbers = #tpu.dot_dimension_numbers<[1], [0], [0], [1], [0, 0, 1, 1], [], []>} : vector<128x128xf32>, vector<128x128xf32>, vector<128x128xf32> -> vector<128x128xf32>
    %c0_3 = arith.constant 0 : index
    %c0_4 = arith.constant 0 : index
    %8 = vector.load %arg4[%c0_3, %c0_4] : memref<128x128xf32, #tpu.memory_space<vmem>>, vector<128x128xf32>
    tpu.vector_store %arg4[%c0_3, %c0_4], %7 {strides = array<i32>} : memref<128x128xf32, #tpu.memory_space<vmem>>, vector<128x128xf32>,
    return
  }
  func.func @transform_0(%arg0: i32, %arg1: memref<1xi32, #tpu.memory_space<smem>>) -> (i32, i32) {
    %c0_i32 = arith.constant 0 : i32
    %c0_i32_0 = arith.constant 0 : i32
    return %arg0, %c0_i32 : i32, i32
  }
  func.func @transform_1(%arg0: i32, %arg1: memref<1xi32, #tpu.memory_space<smem>>) -> (i32, i32) {
    %c0_i32 = arith.constant 0 : i32
    %c0_i32_0 = arith.constant 0 : i32
    %c0_i32_1 = arith.constant 0 : i32
    return %c0_i32, %c0_i32_0 : i32, i32
  }
  func.func @transform_2(%arg0: i32, %arg1: memref<1xi32, #tpu.memory_space<smem>>) -> (i32, i32) {
    %c0_i32 = arith.constant 0 : i32
    %c0_i32_0 = arith.constant 0 : i32
    return %arg0, %c0_i32 : i32, i32
  }
}

</mosaic_0001>

<llo_original>
// kernel: tpu_custom_call.1
$region0: #{tpu_custom_call.1}
  #allocation0 [shape = 'u32[]', space=smem, size = 0x4, offset = 0x4, fixed_abs, tag = 'smem constant byte address 0x4 - core index']
  #allocation1 [shape = 'u32[72,128]{1,0:T(1,128)}', space=vmem, size = 0x9000, scoped, tag = 'internal scratch']
  #allocation2 [shape = 's32[1]{0}', space=sflag, size = 0x4, scoped, tag = 'scoped memory for tpu_custom_call.1']
  #allocation3 [shape = 's32[1]{0:T(128)S(6)}', space=smem, size = 0x200, scoped, tag = 'prefetched SMEM operand 0']
  %s0 = inlined_call_operand.<no memory space> [shape: s32[1], index: 0, kind: input, shape index: {}]
  %s1 = inlined_call_operand.vmem [shape: s32[256,1], index: 1, kind: input, shape index: {}]
  %s2 = inlined_call_operand.vmem [shape: f32[128,128], index: 2, kind: input, shape index: {}]
  %s3 = inlined_call_operand.hbm [shape: f32[256,128], index: 3, kind: output, shape index: {}]
  %s4 = sld [smem:[#allocation0]]
  $region41: #{tpu_custom_call.1} parent=0
    _
  %s6 = ssub.s32 1, %s4
  %s7 = scalar_select 0, %s6, %s4
  %8 = sst [smem:[#allocation3]] %s0
  $region1: #{tpu_custom_call.1} parent=0
    #allocation4 [shape = 'u8[131072]{0}', space=vmem, size = 0x20000, scoped, tag = 'output window, operand 0']
    #allocation5 [shape = 's32[2]{0}', space=sflag, size = 0x8, scoped, tag = 'scoped memory for tpu_custom_call.1']
    %9 = vsyncpa [#allocation5], 0
    %s10 = scalar_lea.sflag [#allocation5], 1
    %11 = vsyncpa %s10, 0
    loop: start=0, step=1, limit=4
    $region2: #{tpu_custom_call.1} parent=1 // loop_pre_header
      _
    $region3: #{tpu_custom_call.1} parent=1 // loop_header
      %s13 = sphi 0, %s17
      %p14 = scmp.ge.s32.totalorder %s13, 4
      %s23 = sphi 0, %s25
      %s26 = sphi 0, %s23
      %s27 = sphi 0, %s26
      %s43 = sphi 0, %s27
      %s47 = sphi 0, %s47
      %s49 = sphi 0, %s47
      %s50 = sphi 0, %s49
      %s64 = sphi 0, %s50
      %s70 = sphi 0, %s72
      %s73 = sphi 0, %s70
      %s74 = sphi 0, %s73
      %s90 = sphi 0, %s74
    $region4: #{tpu_custom_call.1} parent=1 // loop_header_branch
      %16 = sbr.rel (%p14) target = $region8
    $region5: #{tpu_custom_call.1} parent=1 // loop_body
      %s18 = ssub.s32 %s13, 1
      %s19 = ssub.s32 %s13, 2
      %s20 = sadd.s32 %s13, 1
      %s21 = ssub.s32 %s13, %s20
      %p22 = scmp.eq.s32.totalorder %s21, 0
      %s24 = sadd.s32 %s23, 1
      %s25 = scalar_select %p22, %s23, %s24
      %p28 = pneg %p22
      %p29 = scmp.eq.s32.totalorder %s13, 1
      %p30 = por %p28, %p29
      %p31 = scmp.ne.s32.totalorder %s23, %s26
      %p32 = scmp.eq.s32.totalorder %s13, 0
      %p33 = por %p31, %p32
      %p34 = scmp.ne.s32.totalorder %s23, %s26
      %p35 = scmp.eq.s32.totalorder %s18, 1
      %p36 = por %p34, %p35
      %p37 = scmp.ne.s32.totalorder %s26, %s27
      %p38 = scmp.eq.s32.totalorder %s18, 0
      %p39 = por %p37, %p38
      %p40 = scmp.ne.s32.totalorder %s26, %s27
      %p41 = scmp.eq.s32.totalorder %s19, 1
      %p42 = por %p40, %p41
      %p44 = scmp.ne.s32.totalorder %s27, %s43
      %p45 = scmp.eq.s32.totalorder %s19, 0
      %p46 = por %p44, %p45
      %s48 = sadd.s32 %s47, 1
      %p51 = scmp.eq.s32.totalorder %s13, 1
      %p52 = scmp.ne.s32.totalorder %s47, %s49
      %p53 = scmp.eq.s32.totalorder %s13, 0
      %p54 = por %p52, %p53
      %p55 = scmp.ne.s32.totalorder %s47, %s49
      %p56 = scmp.eq.s32.totalorder %s18, 1
      %p57 = por %p55, %p56
      %p58 = scmp.ne.s32.totalorder %s49, %s50
      %p59 = scmp.eq.s32.totalorder %s18, 0
      %p60 = por %p58, %p59
      %p61 = scmp.ne.s32.totalorder %s49, %s50
      %p62 = scmp.eq.s32.totalorder %s19, 1
      %p63 = por %p61, %p62
      %p65 = scmp.ne.s32.totalorder %s50, %s64
      %p66 = scmp.eq.s32.totalorder %s19, 0
      %p67 = por %p65, %p66
      %s68 = ssub.s32 %s13, %s20
      %p69 = scmp.eq.s32.totalorder %s68, 0
      %s71 = sadd.s32 %s70, 1
      %s72 = scalar_select %p69, %s70, %s71
      %p75 = pneg %p69
      %p76 = scmp.eq.s32.totalorder %s13, 1
      %p77 = por %p75, %p76
      %p78 = scmp.ne.s32.totalorder %s70, %s73
      %p79 = scmp.eq.s32.totalorder %s13, 0
      %p80 = por %p78, %p79
      %p81 = scmp.ne.s32.totalorder %s70, %s73
      %p82 = scmp.eq.s32.totalorder %s18, 1
      %p83 = por %p81, %p82
      %p84 = scmp.ne.s32.totalorder %s73, %s74
      %p85 = scmp.eq.s32.totalorder %s18, 0
      %p86 = por %p84, %p85
      %p87 = scmp.ne.s32.totalorder %s73, %s74
      %p88 = scmp.eq.s32.totalorder %s19, 1
      %p89 = por %p87, %p88
      %p91 = scmp.ne.s32.totalorder %s74, %s90
      %p92 = scmp.eq.s32.totalorder %s19, 0
      %p93 = por %p91, %p92
      %p94 = scmp.le.s32.totalorder 1, %s13
      %p95 = scmp.lt.s32.totalorder %s13, 3
      %p96 = pnand %p94, %p95
      %p97 = pneg %p96
      // Predicated region
      $region9: #{tpu_custom_call.1} parent=5 // pred_check
        _
      $region10: #{tpu_custom_call.1} parent=5 // pred_check_branch
        %99 = sbr.rel (%p96) target = $region12
      $region11: #{tpu_custom_call.1} parent=5 // pred_region
        %s100 = ssub.s32 %s13, 1
        // Predicated region
        $region13: #{tpu_custom_call.1} parent=11 // pred_check
          %p101 = pneg %p60
        $region14: #{tpu_custom_call.1} parent=11 // pred_check_branch
          %103 = sbr.rel (%p101) target = $region16
        $region15: #{tpu_custom_call.1} parent=11 // pred_region
          _
        $region16: #{tpu_custom_call.1} parent=11 // pred_fallthru
          _
      $region12: #{tpu_custom_call.1} parent=5 // pred_fallthru
        _
      %p104 = scmp.lt.s32.totalorder %s13, 2
      // Predicated region
      $region17: #{tpu_custom_call.1} parent=5 // pred_check
        %p105 = pneg %p104
      $region18: #{tpu_custom_call.1} parent=5 // pred_check_branch
        %107 = sbr.rel (%p105) target = $region20
      $region19: #{tpu_custom_call.1} parent=5 // pred_region
        // Predicated region
        $region21: #{tpu_custom_call.1} parent=19 // pred_check
          %p108 = pneg %p33
        $region22: #{tpu_custom_call.1} parent=19 // pred_check_branch
          %110 = sbr.rel (%p108) target = $region24
        $region23: #{tpu_custom_call.1} parent=19 // pred_region
          %s111 = smul.u32 16, %s13
          %p112 = scmp.lt.s32.totalorder %s111, 31
          %s113 = scalar_select %p112, %s111, 31
          %s114 = smul.addr %s113, 8
          %s115 = scalar_lea.vmem %s1, %s114
          %s116 = smul.u32 16, %s13
        $region24: #{tpu_custom_call.1} parent=19 // pred_fallthru
          _
      $region20: #{tpu_custom_call.1} parent=5 // pred_fallthru
        _
      %p117 = scmp.le.s32.totalorder 1, %s13
      %p118 = scmp.lt.s32.totalorder %s13, 3
      %p119 = pnand %p117, %p118
      %p120 = pneg %p119
      // Predicated region
      $region25: #{tpu_custom_call.1} parent=5 // pred_check
        _
      $region26: #{tpu_custom_call.1} parent=5 // pred_check_branch
        %122 = sbr.rel (%p119) target = $region28
      $region27: #{tpu_custom_call.1} parent=5 // pred_region
        %s123 = ssub.s32 %s13, 1
        %s124 = smul.u32 16, %s18
        %p125 = scmp.lt.s32.totalorder %s124, 31
        %s126 = scalar_select %p125, %s124, 31
        %s127 = smul.addr %s126, 8
        %s128 = scalar_lea.vmem %s1, %s127
        %p129 = pneg %p39
        %p130 = pneg %p36
        %p131 = pneg %p60
        %p132 = pneg %p57
        %p133 = pneg %p86
        %p134 = pneg %p83
        %s135 = sand.u32 %s73, 1
        %s136 = scalar_lea.sflag [#allocation5], %s135
        %s137 = sand.u32 %s73, 1
        %s138 = smul.addr %s137, 128
        %s139 = scalar_lea.vmem [#allocation4], %s138
        %s140 = smul.u32 16, %s18
        %p141 = scmp.lt.s32.totalorder %s140, 31
        %s142 = scalar_select %p141, %s140, 31
        %s143 = smul.addr %s142, 8
        %s144 = scalar_lea.vmem %s1, %s143
        %s145 = smul.u32 16, %s18
        %s146 = smul.u32 16, %s18
        %v147 = vld [vmem:[%s144] sm:$0xff]
        %v148 = vld [vmem:[%s144 + $0x8] sm:$0xff]
        %v149 = vld [vmem:[%s144 + $0x10] sm:$0xff]
        %v150 = vld [vmem:[%s144 + $0x18] sm:$0xff]
        %v151 = vld [vmem:[%s144 + $0x20] sm:$0xff]
        %v152 = vld [vmem:[%s144 + $0x28] sm:$0xff]
        %v153 = vld [vmem:[%s144 + $0x30] sm:$0xff]
        %v154 = vld [vmem:[%s144 + $0x38] sm:$0xff]
        %v155 = vld [vmem:[%s144 + $0x40] sm:$0xff]
        %v156 = vld [vmem:[%s144 + $0x48] sm:$0xff]
        %v157 = vld [vmem:[%s144 + $0x50] sm:$0xff]
        %v158 = vld [vmem:[%s144 + $0x58] sm:$0xff]
        %v159 = vld [vmem:[%s144 + $0x60] sm:$0xff]
        %v160 = vld [vmem:[%s144 + $0x68] sm:$0xff]
        %v161 = vld [vmem:[%s144 + $0x70] sm:$0xff]
        %v162 = vld [vmem:[%s144 + $0x78] sm:$0xff]
        %v163 = vlaneseq
        %v164 = vand.u32 %v163, 127
        %165 = vset.pattern.permute.xlu0 0
        %166 = vperm.xlu0 %165, %v147
        %v167 = vpop.permute.xlu0 %166
        %168 = vset.pattern.permute.xlu0 0
        %169 = vperm.xlu0 %168, %v148
        %v170 = vpop.permute.xlu0 %169
        %171 = vset.pattern.permute.xlu0 0
        %172 = vperm.xlu0 %171, %v149
        %v173 = vpop.permute.xlu0 %172
        %174 = vset.pattern.permute.xlu0 0
        %175 = vperm.xlu0 %174, %v150
        %v176 = vpop.permute.xlu0 %175
        %177 = vset.pattern.permute.xlu0 0
        %178 = vperm.xlu0 %177, %v151
        %v179 = vpop.permute.xlu0 %178
        %180 = vset.pattern.permute.xlu0 0
        %181 = vperm.xlu0 %180, %v152
        %v182 = vpop.permute.xlu0 %181
        %183 = vset.pattern.permute.xlu0 0
        %184 = vperm.xlu0 %183, %v153
        %v185 = vpop.permute.xlu0 %184
        %186 = vset.pattern.permute.xlu0 0
        %187 = vperm.xlu0 %186, %v154
        %v188 = vpop.permute.xlu0 %187
        %189 = vset.pattern.permute.xlu0 0
        %190 = vperm.xlu0 %189, %v155
        %v191 = vpop.permute.xlu0 %190
        %192 = vset.pattern.permute.xlu0 0
        %193 = vperm.xlu0 %192, %v156
        %v194 = vpop.permute.xlu0 %193
        %195 = vset.pattern.permute.xlu0 0
        %196 = vperm.xlu0 %195, %v157
        %v197 = vpop.permute.xlu0 %196
        %198 = vset.pattern.permute.xlu0 0
        %199 = vperm.xlu0 %198, %v158
        %v200 = vpop.permute.xlu0 %199
        %201 = vset.pattern.permute.xlu0 0
        %202 = vperm.xlu0 %201, %v159
        %v203 = vpop.permute.xlu0 %202
        %204 = vset.pattern.permute.xlu0 0
        %205 = vperm.xlu0 %204, %v160
        %v206 = vpop.permute.xlu0 %205
        %207 = vset.pattern.permute.xlu0 0
        %208 = vperm.xlu0 %207, %v161
        %v209 = vpop.permute.xlu0 %208
        %210 = vset.pattern.permute.xlu0 0
        %211 = vperm.xlu0 %210, %v162
        %v212 = vpop.permute.xlu0 %211
        %vm213 = vcmp.eq.s32.totalorder %v167, %v164
        %vm214 = vcmp.eq.s32.totalorder %v170, %v164
        %vm215 = vcmp.eq.s32.totalorder %v173, %v164
        %vm216 = vcmp.eq.s32.totalorder %v176, %v164
        %vm217 = vcmp.eq.s32.totalorder %v179, %v164
        %vm218 = vcmp.eq.s32.totalorder %v182, %v164
        %vm219 = vcmp.eq.s32.totalorder %v185, %v164
        %vm220 = vcmp.eq.s32.totalorder %v188, %v164
        %vm221 = vcmp.eq.s32.totalorder %v191, %v164
        %vm222 = vcmp.eq.s32.totalorder %v194, %v164
        %vm223 = vcmp.eq.s32.totalorder %v197, %v164
        %vm224 = vcmp.eq.s32.totalorder %v200, %v164
        %vm225 = vcmp.eq.s32.totalorder %v203, %v164
        %vm226 = vcmp.eq.s32.totalorder %v206, %v164
        %vm227 = vcmp.eq.s32.totalorder %v209, %v164
        %vm228 = vcmp.eq.s32.totalorder %v212, %v164
        %v229 = vsel %vm213, 1, 0
        %v230 = vsel %vm214, 1, 0
        %v231 = vsel %vm215, 1, 0
        %v232 = vsel %vm216, 1, 0
        %v233 = vsel %vm217, 1, 0
        %v234 = vsel %vm218, 1, 0
        %v235 = vsel %vm219, 1, 0
        %v236 = vsel %vm220, 1, 0
        %v237 = vsel %vm221, 1, 0
        %v238 = vsel %vm222, 1, 0
        %v239 = vsel %vm223, 1, 0
        %v240 = vsel %vm224, 1, 0
        %v241 = vsel %vm225, 1, 0
        %v242 = vsel %vm226, 1, 0
        %v243 = vsel %vm227, 1, 0
        %v244 = vsel %vm228, 1, 0
        %v245 = vcvt.s32.f32 %v229
        %v246 = vcvt.s32.f32 %v230
        %v247 = vcvt.s32.f32 %v231
        %v248 = vcvt.s32.f32 %v232
        %v249 = vcvt.s32.f32 %v233
        %v250 = vcvt.s32.f32 %v234
        %v251 = vcvt.s32.f32 %v235
        %v252 = vcvt.s32.f32 %v236
        %v253 = vcvt.s32.f32 %v237
        %v254 = vcvt.s32.f32 %v238
        %v255 = vcvt.s32.f32 %v239
        %v256 = vcvt.s32.f32 %v240
        %v257 = vcvt.s32.f32 %v241
        %v258 = vcvt.s32.f32 %v242
        %v259 = vcvt.s32.f32 %v243
        %v260 = vcvt.s32.f32 %v244
        %v261 = vld [vmem:[%s2] sm:$0xff]
        %v262 = vld [vmem:[%s2 + $0x8] sm:$0xff]
        %v263 = vld [vmem:[%s2 + $0x10] sm:$0xff]
        %v264 = vld [vmem:[%s2 + $0x18] sm:$0xff]
        %v265 = vld [vmem:[%s2 + $0x20] sm:$0xff]
        %v266 = vld [vmem:[%s2 + $0x28] sm:$0xff]
        %v267 = vld [vmem:[%s2 + $0x30] sm:$0xff]
        %v268 = vld [vmem:[%s2 + $0x38] sm:$0xff]
        %v269 = vld [vmem:[%s2 + $0x40] sm:$0xff]
        %v270 = vld [vmem:[%s2 + $0x48] sm:$0xff]
        %v271 = vld [vmem:[%s2 + $0x50] sm:$0xff]
        %v272 = vld [vmem:[%s2 + $0x58] sm:$0xff]
        %v273 = vld [vmem:[%s2 + $0x60] sm:$0xff]
        %v274 = vld [vmem:[%s2 + $0x68] sm:$0xff]
        %v275 = vld [vmem:[%s2 + $0x70] sm:$0xff]
        %v276 = vld [vmem:[%s2 + $0x78] sm:$0xff]
        %277 = vmatpush.msra.mxu0 %v276
        %278 = vmatpush.msra.mxu0 %v275
        %279 = vmatpush.msra.mxu0 %v274
        %280 = vmatpush.msra.mxu0 %v273
        %281 = vmatpush.msra.mxu0 %v272
        %282 = vmatpush.msra.mxu0 %v271
        %283 = vmatpush.msra.mxu0 %v270
        %284 = vmatpush.msra.mxu0 %v269
        %285 = vmatpush.msra.mxu0 %v268
        %286 = vmatpush.msra.mxu0 %v267
        %287 = vmatpush.msra.mxu0 %v266
        %288 = vmatpush.msra.mxu0 %v265
        %289 = vmatpush.msra.mxu0 %v264
        %290 = vmatpush.msra.mxu0 %v263
        %291 = vmatpush.msra.mxu0 %v262
        %292 = vmatpush.msra.mxu0 %v261
        %293 = vmatmul.f32.gmra.mxu0 %v245
        %v294 = vpop.f32.mrf.mxu0
        %v295 = vadd.f32 0.0, %v294
        %296 = vmatmul.f32.gmra.mxu0 %v246
        %v297 = vpop.f32.mrf.mxu0
        %v298 = vadd.f32 0.0, %v297
        %299 = vmatmul.f32.gmra.mxu0 %v247
        %v300 = vpop.f32.mrf.mxu0
        %v301 = vadd.f32 0.0, %v300
        %302 = vmatmul.f32.gmra.mxu0 %v248
        %v303 = vpop.f32.mrf.mxu0
        %v304 = vadd.f32 0.0, %v303
        %305 = vmatmul.f32.gmra.mxu0 %v249
        %v306 = vpop.f32.mrf.mxu0
        %v307 = vadd.f32 0.0, %v306
        %308 = vmatmul.f32.gmra.mxu0 %v250
        %v309 = vpop.f32.mrf.mxu0
        %v310 = vadd.f32 0.0, %v309
        %311 = vmatmul.f32.gmra.mxu0 %v251
        %v312 = vpop.f32.mrf.mxu0
        %v313 = vadd.f32 0.0, %v312
        %314 = vmatmul.f32.gmra.mxu0 %v252
        %v315 = vpop.f32.mrf.mxu0
        %v316 = vadd.f32 0.0, %v315
        %317 = vmatmul.f32.gmra.mxu0 %v253
        %v318 = vpop.f32.mrf.mxu0
        %v319 = vadd.f32 0.0, %v318
        %320 = vmatmul.f32.gmra.mxu0 %v254
        %v321 = vpop.f32.mrf.mxu0
        %v322 = vadd.f32 0.0, %v321
        %323 = vmatmul.f32.gmra.mxu0 %v255
        %v324 = vpop.f32.mrf.mxu0
        %v325 = vadd.f32 0.0, %v324
        %326 = vmatmul.f32.gmra.mxu0 %v256
        %v327 = vpop.f32.mrf.mxu0
        %v328 = vadd.f32 0.0, %v327
        %329 = vmatmul.f32.gmra.mxu0 %v257
        %v330 = vpop.f32.mrf.mxu0
        %v331 = vadd.f32 0.0, %v330
        %332 = vmatmul.f32.gmra.mxu0 %v258
        %v333 = vpop.f32.mrf.mxu0
        %v334 = vadd.f32 0.0, %v333
        %335 = vmatmul.f32.gmra.mxu0 %v259
        %v336 = vpop.f32.mrf.mxu0
        %v337 = vadd.f32 0.0, %v336
        %338 = vmatmul.f32.gmra.mxu0 %v260
        %v339 = vpop.f32.mrf.mxu0
        %v340 = vadd.f32 0.0, %v339
        %341 = vdwg.mxu0
        %342 = vst [vmem:[%s139] sm:$0xff] %v295
        %343 = vst [vmem:[%s139 + $0x8] sm:$0xff] %v298
        %344 = vst [vmem:[%s139 + $0x10] sm:$0xff] %v301
        %345 = vst [vmem:[%s139 + $0x18] sm:$0xff] %v304
        %346 = vst [vmem:[%s139 + $0x20] sm:$0xff] %v307
        %347 = vst [vmem:[%s139 + $0x28] sm:$0xff] %v310
        %348 = vst [vmem:[%s139 + $0x30] sm:$0xff] %v313
        %349 = vst [vmem:[%s139 + $0x38] sm:$0xff] %v316
        %350 = vst [vmem:[%s139 + $0x40] sm:$0xff] %v319
        %351 = vst [vmem:[%s139 + $0x48] sm:$0xff] %v322
        %352 = vst [vmem:[%s139 + $0x50] sm:$0xff] %v325
        %353 = vst [vmem:[%s139 + $0x58] sm:$0xff] %v328
        %354 = vst [vmem:[%s139 + $0x60] sm:$0xff] %v331
        %355 = vst [vmem:[%s139 + $0x68] sm:$0xff] %v334
        %356 = vst [vmem:[%s139 + $0x70] sm:$0xff] %v337
        %357 = vst [vmem:[%s139 + $0x78] sm:$0xff] %v340
        %s358 = sand.u32 %s73, 1
        %s359 = scalar_lea.sflag [#allocation5], %s358
        %s360 = sand.u32 %s73, 1
        %s361 = smul.addr %s360, 128
        %s362 = scalar_lea.vmem [#allocation4], %s361
        // Predicated region
        $region29: #{tpu_custom_call.1} parent=27 // pred_check
          %p363 = pneg %p83
        $region30: #{tpu_custom_call.1} parent=27 // pred_check_branch
          %365 = sbr.rel (%p363) target = $region32
        $region31: #{tpu_custom_call.1} parent=27 // pred_region
          %s366 = smul.u32 16, %s18
          %368 = vsyncadd %s359, 0
          %s369 = smul.addr %s366, 8
          %s370 = scalar_lea.hbm %s3, %s369
          %s371 = sshll.u32 %s362, 4
          %s372 = int_to_ptr.vmem [resolvable:$true] %s371
          %s373 = sshll.u32 %s370, 4
          %s374 = int_to_ptr.hbm [resolvable:$true] %s373
          %379 = dma.vmem_to_hbm [thread:$0]  %s372, 2048, %s374, %s359, 128, 128, 8
        $region32: #{tpu_custom_call.1} parent=27 // pred_fallthru
          _
      $region28: #{tpu_custom_call.1} parent=5 // pred_fallthru
        _
      %p380 = scmp.le.s32.totalorder 2, %s13
      // Predicated region
      $region33: #{tpu_custom_call.1} parent=5 // pred_check
        %p381 = pneg %p380
      $region34: #{tpu_custom_call.1} parent=5 // pred_check_branch
        %383 = sbr.rel (%p381) target = $region36
      $region35: #{tpu_custom_call.1} parent=5 // pred_region
        %s384 = ssub.s32 %s13, 2
        // Predicated region
        $region37: #{tpu_custom_call.1} parent=35 // pred_check
          %p385 = pneg %p89
        $region38: #{tpu_custom_call.1} parent=35 // pred_check_branch
          %387 = sbr.rel (%p385) target = $region40
        $region39: #{tpu_custom_call.1} parent=35 // pred_region
          %s388 = sand.u32 %s74, 1
          %s389 = scalar_lea.sflag [#allocation5], %s388
          %s390 = sand.u32 %s74, 1
          %s391 = smul.addr %s390, 128
          %s392 = scalar_lea.vmem [#allocation4], %s391
          %394 = dma.done %s389, 2048
        $region40: #{tpu_custom_call.1} parent=35 // pred_fallthru
          _
      $region36: #{tpu_custom_call.1} parent=5 // pred_fallthru
        _
    $region6: #{tpu_custom_call.1} parent=1 // loop_footer
      %s17 = sadd.s32 1, %s13
    $region7: #{tpu_custom_call.1} parent=1 // loop_footer_branch
      %12 = sbr.rel target = $region3
    $region8: #{tpu_custom_call.1} parent=1 // loop_exit
      _
    %395 = vsyncpa [#allocation5], 1
    %s396 = scalar_lea.sflag [#allocation5], 1
    %397 = vsyncpa %s396, 1

</llo_original>
